<compile_context>
chip_gen: v5e
topology: v5e:2x2
jax: 0.10.0
libtpu: 0.0.40
codegen_flags: <defaults>
</compile_context>

<pallas_src>
import jax
import jax.numpy as jnp
from jax.experimental import pallas as pl
from jax.experimental.pallas import tpu as pltpu

EPS = 1e-5
OUT_PAD = 128  # lane-dense padded classifier width (real output = first 2 columns)


def toynet_kernel(x_ref, w1_ref, w2_ref, vecs_ref, w3b_ref, out_ref):
    """Fused forward pass. Single grid point; all operands resident in VMEM."""
    x = x_ref[...]                                   # (B, 2)
    D = w2_ref.shape[0]

    b1, g1, be1 = vecs_ref[0:1, :], vecs_ref[1:2, :], vecs_ref[2:3, :]
    b2, g2, be2 = vecs_ref[3:4, :], vecs_ref[4:5, :], vecs_ref[5:6, :]

    def bn_relu(h, g, be):
        # Training-mode BatchNorm1d: batch stats, biased variance, one-pass form,
        # folded into a single scale/shift, fused with ReLU.
        mu = jnp.mean(h, axis=0, keepdims=True)
        ms = jnp.mean(h * h, axis=0, keepdims=True)
        var = jnp.maximum(ms - mu * mu, 0.0)
        scale = g * jax.lax.rsqrt(var + EPS)
        shift = be - mu * scale
        return jnp.maximum(h * scale + shift, 0.0)

    # ---- Linear(2, D): K=2 contraction -> VPU broadcast-FMA (skip the MXU) ----
    h = x[:, 0:1] * w1_ref[0:1, :] + x[:, 1:2] * w1_ref[1:2, :] + b1     # (B, D)
    h = bn_relu(h, g1, be1)

    # ---- Linear(D, D): MXU ----
    h = jnp.dot(h, w2_ref[...], preferred_element_type=jnp.float32) + b2
    h = bn_relu(h, g2, be2)

    # ---- classifier Linear(D, 2), written lane-dense into (B, OUT_PAD) ----
    w3 = w3b_ref[0:D, :]                              # (D, OUT_PAD)
    b3 = w3b_ref[D:D + 1, :]                          # (1, OUT_PAD)
    out_ref[...] = (jnp.dot(h, w3, preferred_element_type=jnp.float32)
                    + b3).astype(out_ref.dtype)


def pack_params(p):
    """One-time packing of the small parameter vectors (done outside the hot path)."""
    D = p["w2"].shape[0]
    vecs = jnp.zeros((8, D), jnp.float32)
    for i, name in enumerate(("b1", "g1", "be1", "b2", "g2", "be2")):
        vecs = vecs.at[i].set(p[name].reshape(D))
    w3b = jnp.zeros((D + 8, OUT_PAD), jnp.float32)
    w3b = w3b.at[:D, :2].set(p["w3"])
    w3b = w3b.at[D, :2].set(p["b3"].reshape(2))
    return dict(w1=p["w1"], w2=p["w2"], vecs=vecs, w3b=w3b)


@jax.jit
def toynet_forward(x, packed):
    B = x.shape[0]
    vmem = pl.BlockSpec(memory_space=pltpu.MemorySpace.VMEM)
    out = pl.pallas_call(
        toynet_kernel,
        out_shape=jax.ShapeDtypeStruct((B, OUT_PAD), jnp.float32),
        in_specs=[vmem] * 5,
        out_specs=vmem,
    )(x, packed["w1"], packed["w2"], packed["vecs"], packed["w3b"])
    return out[:, :2]


def init_params(output_dim, key):
    """Deterministic synthetic parameters (shapes follow ToyNet.__init__)."""
    ks = jax.random.split(key, 6)

    def lin(k, fan_in, fan_out):
        bound = 1.0 / jnp.sqrt(jnp.float32(fan_in))
        w = jax.random.uniform(k, (fan_in, fan_out), jnp.float32, -bound, bound)
        kb = jax.random.fold_in(k, 1)
        b = jax.random.uniform(kb, (1, fan_out), jnp.float32, -bound, bound)
        return w, b

    w1, b1 = lin(ks[0], 2, output_dim)
    w2, b2 = lin(ks[1], output_dim, output_dim)
    w3, b3 = lin(ks[2], output_dim, 2)
    # BatchNorm1d affine params (PyTorch default init gamma=1, beta=0), slightly
    # perturbed so the affine path is actually exercised.
    g1 = 1.0 + 0.01 * jax.random.normal(ks[3], (1, output_dim), jnp.float32)
    be1 = 0.01 * jax.random.normal(ks[4], (1, output_dim), jnp.float32)
    g2 = 1.0 + 0.01 * jax.random.normal(ks[5], (1, output_dim), jnp.float32)
    be2 = 0.01 * jax.random.normal(jax.random.fold_in(ks[5], 7), (1, output_dim), jnp.float32)
    return dict(w1=w1, b1=b1, g1=g1, be1=be1,
                w2=w2, b2=b2, g2=g2, be2=be2,
                w3=w3, b3=b3)


def toynet_reference(x, p):
    """Pure-JAX reference (two-pass variance) for correctness checking."""
    def bn_relu(h, g, be):
        mu = jnp.mean(h, axis=0, keepdims=True)
        var = jnp.mean((h - mu) ** 2, axis=0, keepdims=True)
        return jnp.maximum((h - mu) / jnp.sqrt(var + EPS) * g + be, 0.0)

    h = bn_relu(x @ p["w1"] + p["b1"], p["g1"], p["be1"])
    h = bn_relu(h @ p["w2"] + p["b2"], p["g2"], p["be2"])
    return h @ p["w3"] + p["b3"]


if __name__ == "__main__":
    key = jax.random.PRNGKey(0)
    kx, kp = jax.random.split(key)

    batch, output_dim = 8, 32
    x = jax.random.normal(kx, (batch, 2), jnp.float32)
    params = init_params(output_dim, kp)
    packed = pack_params(params)

    out = jax.block_until_ready(toynet_forward(x, packed))

    ref = toynet_reference(x, params)
    assert out.shape == (batch, 2)
    assert jnp.allclose(out, ref, atol=1e-4, rtol=1e-4), "mismatch vs pure-JAX reference"
    print("KERNEL_OK")
</pallas_src>

<mosaic_0001>
module attributes {stable_mosaic.version = 11 : i64} {
  func.func @toynet_kernel(%arg0: memref<8x2xf32, #tpu.memory_space<vmem>>, %arg1: memref<2x32xf32, #tpu.memory_space<vmem>>, %arg2: memref<32x32xf32, #tpu.memory_space<vmem>>, %arg3: memref<8x32xf32, #tpu.memory_space<vmem>>, %arg4: memref<40x128xf32, #tpu.memory_space<vmem>>, %arg5: memref<8x128xf32, #tpu.memory_space<vmem>>) attributes {dimension_semantics = [], scalar_prefetch = 0 : i64, scratch_operands = 0 : i64, tpu.core_type = #tpu.core_type<tc>} {
    %c0 = arith.constant 0 : index
    %c0_0 = arith.constant 0 : index
    %0 = vector.load %arg0[%c0, %c0_0] : memref<8x2xf32, #tpu.memory_space<vmem>>, vector<8x2xf32>
    %c0_1 = arith.constant 0 : index
    %c0_2 = arith.constant 0 : index
    %1 = vector.load %arg3[%c0_1, %c0_2] : memref<8x32xf32, #tpu.memory_space<vmem>>, vector<1x32xf32>
    %c1 = arith.constant 1 : index
    %c0_3 = arith.constant 0 : index
    %2 = vector.load %arg3[%c1, %c0_3] : memref<8x32xf32, #tpu.memory_space<vmem>>, vector<1x32xf32>
    %c2 = arith.constant 2 : index
    %c0_4 = arith.constant 0 : index
    %3 = vector.load %arg3[%c2, %c0_4] : memref<8x32xf32, #tpu.memory_space<vmem>>, vector<1x32xf32>
    %c3 = arith.constant 3 : index
    %c0_5 = arith.constant 0 : index
    %4 = vector.load %arg3[%c3, %c0_5] : memref<8x32xf32, #tpu.memory_space<vmem>>, vector<1x32xf32>
    %c4 = arith.constant 4 : index
    %c0_6 = arith.constant 0 : index
    %5 = vector.load %arg3[%c4, %c0_6] : memref<8x32xf32, #tpu.memory_space<vmem>>, vector<1x32xf32>
    %c5 = arith.constant 5 : index
    %c0_7 = arith.constant 0 : index
    %6 = vector.load %arg3[%c5, %c0_7] : memref<8x32xf32, #tpu.memory_space<vmem>>, vector<1x32xf32>
    %7 = vector.extract_strided_slice %0 {offsets = [0, 0], sizes = [8, 1], strides = [1, 1]} : vector<8x2xf32> to vector<8x1xf32>
    %c0_8 = arith.constant 0 : index
    %c0_9 = arith.constant 0 : index
    %8 = vector.load %arg1[%c0_8, %c0_9] : memref<2x32xf32, #tpu.memory_space<vmem>>, vector<1x32xf32>
    %9 = vector.broadcast %7 : vector<8x1xf32> to vector<8x32xf32>
    %10 = vector.broadcast %8 : vector<1x32xf32> to vector<8x32xf32>
    %11 = arith.mulf %9, %10 : vector<8x32xf32>
    %12 = vector.extract_strided_slice %0 {offsets = [0, 1], sizes = [8, 1], strides = [1, 1]} : vector<8x2xf32> to vector<8x1xf32>
    %c1_10 = arith.constant 1 : index
    %c0_11 = arith.constant 0 : index
    %13 = vector.load %arg1[%c1_10, %c0_11] : memref<2x32xf32, #tpu.memory_space<vmem>>, vector<1x32xf32>
    %14 = vector.broadcast %12 : vector<8x1xf32> to vector<8x32xf32>
    %15 = vector.broadcast %13 : vector<1x32xf32> to vector<8x32xf32>
    %16 = arith.mulf %14, %15 : vector<8x32xf32>
    %17 = arith.addf %11, %16 : vector<8x32xf32>
    %18 = vector.broadcast %1 : vector<1x32xf32> to vector<8x32xf32>
    %19 = arith.addf %17, %18 : vector<8x32xf32>
    %cst = arith.constant dense<0.000000e+00> : vector<32xf32>
    %20 = vector.multi_reduction <add>, %19, %cst [0] : vector<8x32xf32> to vector<32xf32>
    %21 = vector.shape_cast %20 : vector<32xf32> to vector<1x32xf32>
    %cst_12 = arith.constant 8.000000e+00 : f32
    %22 = vector.broadcast %cst_12 : f32 to vector<1x32xf32>
    %23 = arith.divf %21, %22 : vector<1x32xf32>
    %24 = arith.mulf %19, %19 : vector<8x32xf32>
    %cst_13 = arith.constant dense<0.000000e+00> : vector<32xf32>
    %25 = vector.multi_reduction <add>, %24, %cst_13 [0] : vector<8x32xf32> to vector<32xf32>
    %26 = vector.shape_cast %25 : vector<32xf32> to vector<1x32xf32>
    %cst_14 = arith.constant 8.000000e+00 : f32
    %27 = vector.broadcast %cst_14 : f32 to vector<1x32xf32>
    %28 = arith.divf %26, %27 : vector<1x32xf32>
    %29 = arith.mulf %23, %23 : vector<1x32xf32>
    %30 = arith.subf %28, %29 : vector<1x32xf32>
    %cst_15 = arith.constant 0.000000e+00 : f32
    %31 = vector.broadcast %cst_15 : f32 to vector<1x32xf32>
    %32 = arith.maximumf %30, %31 : vector<1x32xf32>
    %cst_16 = arith.constant 9.99999974E-6 : f32
    %33 = vector.broadcast %cst_16 : f32 to vector<1x32xf32>
    %34 = arith.addf %32, %33 : vector<1x32xf32>
    %35 = math.rsqrt %34 : vector<1x32xf32>
    %36 = arith.mulf %2, %35 : vector<1x32xf32>
    %37 = arith.mulf %23, %36 : vector<1x32xf32>
    %38 = arith.subf %3, %37 : vector<1x32xf32>
    %39 = vector.broadcast %36 : vector<1x32xf32> to vector<8x32xf32>
    %40 = arith.mulf %19, %39 : vector<8x32xf32>
    %41 = vector.broadcast %38 : vector<1x32xf32> to vector<8x32xf32>
    %42 = arith.addf %40, %41 : vector<8x32xf32>
    %cst_17 = arith.constant 0.000000e+00 : f32
    %43 = vector.broadcast %cst_17 : f32 to vector<8x32xf32>
    %44 = arith.maximumf %42, %43 : vector<8x32xf32>
    %c0_18 = arith.constant 0 : index
    %c0_19 = arith.constant 0 : index
    %45 = vector.load %arg2[%c0_18, %c0_19] : memref<32x32xf32, #tpu.memory_space<vmem>>, vector<32x32xf32>
    %cst_20 = arith.constant dense<0.000000e+00> : vector<8x32xf32>
    %46 = tpu.matmul %44, %45, %cst_20 {dimension_numbers = #tpu.dot_dimension_numbers<[1], [0], [0], [1], [0, 0, 1, 1], [], []>} : vector<8x32xf32>, vector<32x32xf32>, vector<8x32xf32> -> vector<8x32xf32>
    %47 = vector.broadcast %4 : vector<1x32xf32> to vector<8x32xf32>
    %48 = arith.addf %46, %47 : vector<8x32xf32>
    %cst_21 = arith.constant dense<0.000000e+00> : vector<32xf32>
    %49 = vector.multi_reduction <add>, %48, %cst_21 [0] : vector<8x32xf32> to vector<32xf32>
    %50 = vector.shape_cast %49 : vector<32xf32> to vector<1x32xf32>
    %cst_22 = arith.constant 8.000000e+00 : f32
    %51 = vector.broadcast %cst_22 : f32 to vector<1x32xf32>
    %52 = arith.divf %50, %51 : vector<1x32xf32>
    %53 = arith.mulf %48, %48 : vector<8x32xf32>
    %cst_23 = arith.constant dense<0.000000e+00> : vector<32xf32>
    %54 = vector.multi_reduction <add>, %53, %cst_23 [0] : vector<8x32xf32> to vector<32xf32>
    %55 = vector.shape_cast %54 : vector<32xf32> to vector<1x32xf32>
    %cst_24 = arith.constant 8.000000e+00 : f32
    %56 = vector.broadcast %cst_24 : f32 to vector<1x32xf32>
    %57 = arith.divf %55, %56 : vector<1x32xf32>
    %58 = arith.mulf %52, %52 : vector<1x32xf32>
    %59 = arith.subf %57, %58 : vector<1x32xf32>
    %cst_25 = arith.constant 0.000000e+00 : f32
    %60 = vector.broadcast %cst_25 : f32 to vector<1x32xf32>
    %61 = arith.maximumf %59, %60 : vector<1x32xf32>
    %cst_26 = arith.constant 9.99999974E-6 : f32
    %62 = vector.broadcast %cst_26 : f32 to vector<1x32xf32>
    %63 = arith.addf %61, %62 : vector<1x32xf32>
    %64 = math.rsqrt %63 : vector<1x32xf32>
    %65 = arith.mulf %5, %64 : vector<1x32xf32>
    %66 = arith.mulf %52, %65 : vector<1x32xf32>
    %67 = arith.subf %6, %66 : vector<1x32xf32>
    %68 = vector.broadcast %65 : vector<1x32xf32> to vector<8x32xf32>
    %69 = arith.mulf %48, %68 : vector<8x32xf32>
    %70 = vector.broadcast %67 : vector<1x32xf32> to vector<8x32xf32>
    %71 = arith.addf %69, %70 : vector<8x32xf32>
    %cst_27 = arith.constant 0.000000e+00 : f32
    %72 = vector.broadcast %cst_27 : f32 to vector<8x32xf32>
    %73 = arith.maximumf %71, %72 : vector<8x32xf32>
    %c0_28 = arith.constant 0 : index
    %c0_29 = arith.constant 0 : index
    %74 = vector.load %arg4[%c0_28, %c0_29] : memref<40x128xf32, #tpu.memory_space<vmem>>, vector<32x128xf32>
    %c32 = arith.constant 32 : index
    %c0_30 = arith.constant 0 : index
    %75 = vector.load %arg4[%c32, %c0_30] : memref<40x128xf32, #tpu.memory_space<vmem>>, vector<1x128xf32>
    %cst_31 = arith.constant dense<0.000000e+00> : vector<8x128xf32>
    %76 = tpu.matmul %73, %74, %cst_31 {dimension_numbers = #tpu.dot_dimension_numbers<[1], [0], [0], [1], [0, 0, 1, 1], [], []>} : vector<8x32xf32>, vector<32x128xf32>, vector<8x128xf32> -> vector<8x128xf32>
    %77 = vector.broadcast %75 : vector<1x128xf32> to vector<8x128xf32>
    %78 = arith.addf %76, %77 : vector<8x128xf32>
    %c0_32 = arith.constant 0 : index
    %c0_33 = arith.constant 0 : index
    %79 = vector.load %arg5[%c0_32, %c0_33] : memref<8x128xf32, #tpu.memory_space<vmem>>, vector<8x128xf32>
    tpu.vector_store %arg5[%c0_32, %c0_33], %78 {strides = array<i32>} : memref<8x128xf32, #tpu.memory_space<vmem>>, vector<8x128xf32>,
    return
  }
}

</mosaic_0001>

<llo_original>
// kernel: toynet_forward.1
$region0: #{toynet_forward.1}
  #allocation0 [shape = 'u32[]', space=smem, size = 0x4, offset = 0x4, fixed_abs, tag = 'smem constant byte address 0x4 - core index']
  #allocation1 [shape = 'u32[72,128]{1,0:T(1,128)}', space=vmem, size = 0x9000, scoped, tag = 'internal scratch']
  %s0 = inlined_call_operand.vmem [shape: f32[8,2], index: 0, kind: input, shape index: {}]
  %s1 = inlined_call_operand.vmem [shape: f32[2,32], index: 1, kind: input, shape index: {}]
  %s2 = inlined_call_operand.hbm [shape: f32[32,32], index: 2, kind: input, shape index: {}]
  %s3 = inlined_call_operand.vmem [shape: f32[8,32], index: 3, kind: input, shape index: {}]
  %s4 = inlined_call_operand.hbm [shape: f32[40,128], index: 4, kind: input, shape index: {}]
  %s5 = inlined_call_operand.vmem [shape: f32[8,128], index: 5, kind: output, shape index: {}]
  %s6 = sld [smem:[#allocation0]]
  $region38: #{toynet_forward.1} parent=0
    _
  %s8 = ssub.s32 1, %s6
  %s9 = scalar_select 0, %s8, %s6
  $region1: #{toynet_forward.1} parent=0
    #allocation2 [shape = 'u8[16384]{0}', space=vmem, size = 0x4000, scoped, tag = 'input window, operand 2, single buffered']
    #allocation3 [shape = 's32[1]{0}', space=sflag, size = 0x4, scoped, tag = 'scoped memory for toynet_forward.1']
    #allocation4 [shape = 'u8[20480]{0}', space=vmem, size = 0x5000, scoped, tag = 'input window, operand 4, single buffered']
    #allocation5 [shape = 's32[1]{0}', space=sflag, size = 0x4, scoped, tag = 'scoped memory for toynet_forward.1']
    %10 = vsyncpa [#allocation3], 0
    %11 = vsyncpa [#allocation5], 0
    // Predicated region
    $region2: #{toynet_forward.1} parent=1 // pred_check
      _
    $region3: #{toynet_forward.1} parent=1 // pred_check_branch
      %13 = sbr.rel (0) target = $region5
    $region4: #{toynet_forward.1} parent=1 // pred_region
      _
    $region5: #{toynet_forward.1} parent=1 // pred_fallthru
      _
    // Predicated region
    $region6: #{toynet_forward.1} parent=1 // pred_check
      _
    $region7: #{toynet_forward.1} parent=1 // pred_check_branch
      %15 = sbr.rel (0) target = $region9
    $region8: #{toynet_forward.1} parent=1 // pred_region
      _
    $region9: #{toynet_forward.1} parent=1 // pred_fallthru
      _
    // Predicated region
    $region10: #{toynet_forward.1} parent=1 // pred_check
      _
    $region11: #{toynet_forward.1} parent=1 // pred_check_branch
      %17 = sbr.rel (0) target = $region13
    $region12: #{toynet_forward.1} parent=1 // pred_region
      %19 = vsyncadd [#allocation3], 0
      %s20 = sshll.u32 %s2, 4
      %s21 = int_to_ptr.hbm [resolvable:$true] %s20
      %s22 = sshll.u32 [#allocation2], 4
      %s23 = int_to_ptr.vmem [resolvable:$true] %s22
      %28 = dma.hbm_to_vmem [thread:$0]  %s21, 512, %s23, [#allocation3], 128, 128, 8
    $region13: #{toynet_forward.1} parent=1 // pred_fallthru
      _
    // Predicated region
    $region14: #{toynet_forward.1} parent=1 // pred_check
      _
    $region15: #{toynet_forward.1} parent=1 // pred_check_branch
      %30 = sbr.rel (0) target = $region17
    $region16: #{toynet_forward.1} parent=1 // pred_region
      _
    $region17: #{toynet_forward.1} parent=1 // pred_fallthru
      _
    // Predicated region
    $region18: #{toynet_forward.1} parent=1 // pred_check
      _
    $region19: #{toynet_forward.1} parent=1 // pred_check_branch
      %32 = sbr.rel (0) target = $region21
    $region20: #{toynet_forward.1} parent=1 // pred_region
      %34 = vsyncadd [#allocation5], 0
      %s35 = sshll.u32 %s4, 4
      %s36 = int_to_ptr.hbm [resolvable:$true] %s35
      %s37 = sshll.u32 [#allocation4], 4
      %s38 = int_to_ptr.vmem [resolvable:$true] %s37
      %43 = dma.hbm_to_vmem [thread:$0]  %s36, 640, %s38, [#allocation5], 128, 128, 8
    $region21: #{toynet_forward.1} parent=1 // pred_fallthru
      _
    // Predicated region
    $region22: #{toynet_forward.1} parent=1 // pred_check
      _
    $region23: #{toynet_forward.1} parent=1 // pred_check_branch
      %45 = sbr.rel (0) target = $region25
    $region24: #{toynet_forward.1} parent=1 // pred_region
      %47 = dma.done [#allocation3], 512
    $region25: #{toynet_forward.1} parent=1 // pred_fallthru
      _
    // Predicated region
    $region26: #{toynet_forward.1} parent=1 // pred_check
      _
    $region27: #{toynet_forward.1} parent=1 // pred_check_branch
      %49 = sbr.rel (0) target = $region29
    $region28: #{toynet_forward.1} parent=1 // pred_region
      %51 = dma.done [#allocation5], 640
    $region29: #{toynet_forward.1} parent=1 // pred_fallthru
      _
    %v52 = vld [vmem:[%s0] sm:$0xff]
    %v53 = vld [vmem:[%s3] sm:$0x1]
    %v54 = vld [vmem:[%s3 + $0x1] sm:$0x1]
    %v55 = vld [vmem:[%s3 + $0x2] sm:$0x1]
    %v56 = vld [vmem:[%s3 + $0x3] sm:$0x1]
    %v57 = vld [vmem:[%s3 + $0x4] sm:$0x1]
    %v58 = vld [vmem:[%s3 + $0x5] sm:$0x1]
    %v59 = vld [vmem:[%s1] sm:$0x1]
    %61 = vset.pattern.permute.xlu0 0
    %62 = vperm.xlu0 %61, %v52
    %v63 = vpop.permute.xlu0 %62
    %v65 = vperm.slane %v59, 0
    %v66 = vmul.f32 %v63, %v65
    %v67 = vld [vmem:[%s1 + $0x1] sm:$0x1]
    %68 = vset.pattern.permute.xlu0 1
    %69 = vperm.xlu0 %68, %v52
    %v70 = vpop.permute.xlu0 %69
    %v72 = vperm.slane %v67, 0
    %v73 = vmul.f32 %v70, %v72
    %v74 = vadd.f32 %v66, %v73
    %v75 = vperm.slane %v53, 0
    %v76 = vadd.f32 %v74, %v75
    %vm77 = vcmask 261120
    %v78 = vsel %vm77, %v76, 0.0
    %v79 = vrot.slane %v78, 4
    %v80 = vadd.f32 %v78, %v79
    %v81 = vrot.slane %v80, 2
    %v82 = vadd.f32 %v80, %v81
    %v83 = vrot.slane %v82, 1
    %v84 = vadd.f32 %v82, %v83
    %v85 = vrcp.pop 8.0
    %v86 = vmul.f32 8.0, %v85
    %v87 = vsub.f32 1.0, %v86
    %v88 = vmul.f32 %v85, %v87
    %v89 = vadd.f32 %v85, %v88
    %vm90 = vweird.f32 %v85
    %v91 = vsel %vm90, %v85, %v89
    %v92 = vmul.f32 %v84, %v91
    %v93 = vmul.f32 %v76, %v76
    %v94 = vsel %vm77, %v93, 0.0
    %v95 = vrot.slane %v94, 4
    %v96 = vadd.f32 %v94, %v95
    %v97 = vrot.slane %v96, 2
    %v98 = vadd.f32 %v96, %v97
    %v99 = vrot.slane %v98, 1
    %v100 = vadd.f32 %v98, %v99
    %v101 = vmul.f32 %v100, %v91
    %v102 = vmul.f32 %v92, %v92
    %v103 = vsub.f32 %v101, %v102
    %v104 = vmax.f32 %v103, 0.0
    %v105 = vadd.f32 %v104, 1e-05
    %v106 = vrsqrt.pop %v105
    %v107 = vmul.f32 %v106, %v105
    %v108 = vmul.f32 %v107, %v106
    %v109 = vmul.f32 0.5, %v108
    %v110 = vsub.f32 1.5, %v109
    %v111 = vmul.f32 %v106, %v110
    %vm112 = vweird.f32 %v105
    %vm113 = vweird.f32 %v106
    %vm114 = vmor %vm112, %vm113
    %v115 = vsel %vm114, %v106, %v111
    %v116 = vmul.f32 %v54, %v115
    %v117 = vmul.f32 %v92, %v116
    %v118 = vsub.f32 %v55, %v117
    %v119 = vperm.slane %v116, 0
    %v120 = vmul.f32 %v76, %v119
    %v121 = vperm.slane %v118, 0
    %v122 = vadd.f32 %v120, %v121
    %v123 = vmax.f32 %v122, 0.0
    %v124 = vld [vmem:[#allocation2] sm:$0xff]
    %v125 = vld [vmem:[#allocation2 + $0x8] sm:$0xff]
    %v126 = vld [vmem:[#allocation2 + $0x10] sm:$0xff]
    %v127 = vld [vmem:[#allocation2 + $0x18] sm:$0xff]
    %v128 = vperm.slane %v56, 0
    %v130 = vsel %vm77, %v123, 0
    %132 = vmatpush.msra.mxu0 0.0
    %133 = vmatpush.msra.mxu0 0.0
    %134 = vmatpush.msra.mxu0 0.0
    %135 = vmatpush.msra.mxu0 0.0
    %136 = vmatpush.msra.mxu0 0.0
    %137 = vmatpush.msra.mxu0 0.0
    %138 = vmatpush.msra.mxu0 0.0
    %139 = vmatpush.msra.mxu0 0.0
    %140 = vmatpush.msra.mxu0 0.0
    %141 = vmatpush.msra.mxu0 0.0
    %142 = vmatpush.msra.mxu0 0.0
    %143 = vmatpush.msra.mxu0 0.0
    %144 = vmatpush.msra.mxu0 %v127
    %145 = vmatpush.msra.mxu0 %v126
    %146 = vmatpush.msra.mxu0 %v125
    %147 = vmatpush.msra.mxu0 %v124
    %148 = vmatmul.f32.gmra.mxu0 %v130
    %v149 = vpop.f32.mrf.mxu0
    %v150 = vadd.f32 %v128, %v149
    %151 = vdwg.mxu0
    %v152 = vsel %vm77, %v150, 0.0
    %v153 = vrot.slane %v152, 4
    %v154 = vadd.f32 %v152, %v153
    %v155 = vrot.slane %v154, 2
    %v156 = vadd.f32 %v154, %v155
    %v157 = vrot.slane %v156, 1
    %v158 = vadd.f32 %v156, %v157
    %v159 = vmul.f32 %v158, %v91
    %v160 = vmul.f32 %v150, %v150
    %v161 = vsel %vm77, %v160, 0.0
    %v162 = vrot.slane %v161, 4
    %v163 = vadd.f32 %v161, %v162
    %v164 = vrot.slane %v163, 2
    %v165 = vadd.f32 %v163, %v164
    %v166 = vrot.slane %v165, 1
    %v167 = vadd.f32 %v165, %v166
    %v168 = vmul.f32 %v167, %v91
    %v169 = vmul.f32 %v159, %v159
    %v170 = vsub.f32 %v168, %v169
    %v171 = vmax.f32 %v170, 0.0
    %v172 = vadd.f32 %v171, 1e-05
    %v173 = vrsqrt.pop %v172
    %v174 = vmul.f32 %v173, %v172
    %v175 = vmul.f32 %v174, %v173
    %v176 = vmul.f32 0.5, %v175
    %v177 = vsub.f32 1.5, %v176
    %v178 = vmul.f32 %v173, %v177
    %vm179 = vweird.f32 %v172
    %vm180 = vweird.f32 %v173
    %vm181 = vmor %vm179, %vm180
    %v182 = vsel %vm181, %v173, %v178
    %v183 = vmul.f32 %v57, %v182
    %v184 = vmul.f32 %v159, %v183
    %v185 = vsub.f32 %v58, %v184
    %v186 = vperm.slane %v183, 0
    %v187 = vmul.f32 %v150, %v186
    %v188 = vperm.slane %v185, 0
    %v189 = vadd.f32 %v187, %v188
    %v190 = vmax.f32 %v189, 0.0
    %v191 = vld [vmem:[#allocation4] sm:$0xff]
    %v192 = vld [vmem:[#allocation4 + $0x8] sm:$0xff]
    %v193 = vld [vmem:[#allocation4 + $0x10] sm:$0xff]
    %v194 = vld [vmem:[#allocation4 + $0x18] sm:$0xff]
    %v195 = vld [vmem:[#allocation4 + $0x20] sm:$0x1]
    %v196 = vperm.slane %v195, 0
    %v198 = vsel %vm77, %v190, 0
    %200 = vmatpush.msra.mxu0 0.0
    %201 = vmatpush.msra.mxu0 0.0
    %202 = vmatpush.msra.mxu0 0.0
    %203 = vmatpush.msra.mxu0 0.0
    %204 = vmatpush.msra.mxu0 0.0
    %205 = vmatpush.msra.mxu0 0.0
    %206 = vmatpush.msra.mxu0 0.0
    %207 = vmatpush.msra.mxu0 0.0
    %208 = vmatpush.msra.mxu0 0.0
    %209 = vmatpush.msra.mxu0 0.0
    %210 = vmatpush.msra.mxu0 0.0
    %211 = vmatpush.msra.mxu0 0.0
    %212 = vmatpush.msra.mxu0 %v194
    %213 = vmatpush.msra.mxu0 %v193
    %214 = vmatpush.msra.mxu0 %v192
    %215 = vmatpush.msra.mxu0 %v191
    %216 = vmatmul.f32.gmra.mxu0 %v198
    %v217 = vpop.f32.mrf.mxu0
    %v218 = vadd.f32 %v196, %v217
    %219 = vdwg.mxu0
    %220 = vst [vmem:[%s5] sm:$0xff] %v218
    // Predicated region
    $region30: #{toynet_forward.1} parent=1 // pred_check
      _
    $region31: #{toynet_forward.1} parent=1 // pred_check_branch
      %222 = sbr.rel (0) target = $region33
    $region32: #{toynet_forward.1} parent=1 // pred_region
      _
    $region33: #{toynet_forward.1} parent=1 // pred_fallthru
      _
    // Predicated region
    $region34: #{toynet_forward.1} parent=1 // pred_check
      _
    $region35: #{toynet_forward.1} parent=1 // pred_check_branch
      %224 = sbr.rel (0) target = $region37
    $region36: #{toynet_forward.1} parent=1 // pred_region
      _
    $region37: #{toynet_forward.1} parent=1 // pred_fallthru
      _
    %225 = vsyncpa [#allocation3], 1
    %226 = vsyncpa [#allocation5], 1

</llo_original>
